<compile_context>
chip_gen: v7x
topology: tpu7x:2x2x1
jax: 0.10.0
libtpu: 0.0.40
codegen_flags: <defaults>
</compile_context>

<pallas_src>
import math
import functools

import jax
import jax.numpy as jnp
from jax.experimental import pallas as pl
from jax.experimental.pallas import tpu as pltpu


# --------------------------------------------------------------------------------------
# Kernel
# --------------------------------------------------------------------------------------
def _mlp_kernel(n_layers, use_tanh, matmul_dtype, x_ref, *refs):
    """refs = (w0..w_{L-1}, b0..b_{L-1}, out_ref).

    Transposed layout: activations are (features, batch_tile) so batch maps to the lane
    dimension (dense vld/vst, unmasked output stores).  Weights are (out_f, in_f)
    (PyTorch layout); biases (out_f, 1) broadcast along lanes.
    """
    out_ref = refs[-1]
    w_refs = refs[:n_layers]
    b_refs = refs[n_layers:2 * n_layers]

    h = x_ref[...]  # (in_f, batch_tile)
    for li in range(n_layers):
        w = w_refs[li][...]                      # (out_f, in_f)
        b = b_refs[li][...].astype(jnp.float32)  # (out_f, 1)
        if matmul_dtype is not None:
            h = h.astype(matmul_dtype)
            w = w.astype(matmul_dtype)
        h = jnp.dot(w, h, preferred_element_type=jnp.float32) + b  # (out_f, batch_tile)
        if li < n_layers - 1:
            h = jnp.maximum(h, 0.0)  # ReLU
        elif use_tanh:
            h = jnp.tanh(h)

    out_ref[...] = h.astype(out_ref.dtype)


# --------------------------------------------------------------------------------------
# Tile selection
# --------------------------------------------------------------------------------------
def _round_up(x, m):
    return ((x + m - 1) // m) * m


def _choose_batch_tile(batch, feat_dims, vmem_budget_bytes=24 << 20):
    """Single grid step unless the whole batch exceeds a conservative VMEM budget.

    Per-step pipeline overhead (~0.35 us) plus pad/slice copies dominate this
    microsecond-scale MLP, so tiling (and the v7x megacore split) only pays off once a
    single batch block would blow the VMEM budget.  Budget stays well under v7x's 64 MiB
    physical VMEM."""
    in_f, out_f = feat_dims[0], feat_dims[-1]
    widest = max(feat_dims)
    # f32 bytes per batch column: double-buffered x/out tiles + widest activation, 2x headroom.
    bytes_per_col = 4 * (2 * in_f + 2 * out_f + 2 * widest)
    cap = vmem_budget_bytes // max(bytes_per_col, 1)
    if batch <= cap:
        return batch, 1  # one grid step, blocks == full array dims, no padding
    tile = max(128, (cap // 128) * 128)  # lane-dim blocks must be multiples of 128
    return tile, pl.cdiv(batch, tile)


# --------------------------------------------------------------------------------------
# Wrapper
# --------------------------------------------------------------------------------------
def actor_model_forward(x, params, net_structure, out_shape, tanh=None,
                        batch_tile=None, matmul_dtype=None):
    """Actor_Model MLP forward pass via a single Pallas kernel.

    x: (batch, inner_shape) float32
    params: list of (W (out_f, in_f), b (out_f,)) per Linear layer (PyTorch layout).
    matmul_dtype: e.g. jnp.bfloat16 for bf16-MXU matmuls (f32 accumulate); None keeps
                  input dtype (bit-exact vs the f32 reference).
    Returns (batch, out_shape).
    """
    batch, in_f = x.shape
    n_layers = len(params)
    out_widths = tuple(w.shape[0] for (w, _) in params)
    assert out_widths[-1] == out_shape
    feat_dims = (in_f,) + out_widths

    if batch_tile is None:
        batch_tile, grid = _choose_batch_tile(batch, feat_dims)
    else:
        batch_tile = max(1, min(int(batch_tile), batch))
        if batch_tile < batch:
            batch_tile = _round_up(batch_tile, 128)  # lane-dim block divisibility
        if batch_tile >= batch:
            batch_tile, grid = batch, 1
        else:
            grid = pl.cdiv(batch, batch_tile)

    batch_pad = grid * batch_tile

    # Transpose once so batch sits on the lane dimension inside the kernel.
    x_t = x.T  # (in_f, batch)
    if batch_pad != batch:
        x_t = jnp.pad(x_t, ((0, 0), (0, batch_pad - batch)))

    weights = [w for (w, _) in params]
    biases = [b.reshape(-1, 1) for (_, b) in params]  # (out_f, 1), broadcast along lanes

    in_specs = [pl.BlockSpec((in_f, batch_tile), lambda i: (0, i))]
    for w in weights:
        # Full-array block, constant index_map -> resident, not re-DMA'd per grid step.
        in_specs.append(pl.BlockSpec(w.shape, lambda i: (0, 0)))
    for b in biases:
        in_specs.append(pl.BlockSpec(b.shape, lambda i: (0, 0)))

    out_spec = pl.BlockSpec((out_shape, batch_tile), lambda i: (0, i))

    kernel = functools.partial(_mlp_kernel, n_layers, bool(tanh), matmul_dtype)

    fn = pl.pallas_call(
        kernel,
        out_shape=jax.ShapeDtypeStruct((out_shape, batch_pad), x.dtype),
        grid_spec=pltpu.PrefetchScalarGridSpec(
            num_scalar_prefetch=0,
            grid=(grid,),
            in_specs=in_specs,
            out_specs=out_spec,
        ),
        compiler_params=pltpu.CompilerParams(
            dimension_semantics=("parallel",),   # megacore sharding only matters when grid > 1
            vmem_limit_bytes=32 * 1024 * 1024,   # safe on v5e/v6e/v7x
        ),
    )
    out_t = fn(x_t, *weights, *biases)   # (out_shape, batch_pad)
    out = out_t.T                        # (batch_pad, out_shape)
    if batch_pad != batch:
        out = out[:batch]
    return out


# --------------------------------------------------------------------------------------
# Init + reference
# --------------------------------------------------------------------------------------
def init_actor_params(key, inner_shape, net_structure, out_shape, dtype=jnp.float32):
    """Deterministic init mimicking PyTorch's Linear default (uniform +-1/sqrt(fan_in)).
    Weights stored in PyTorch layout (out_features, in_features)."""
    params = []
    dims = [inner_shape] + list(net_structure) + [out_shape]
    for i in range(len(dims) - 1):
        fan_in, fan_out = dims[i], dims[i + 1]
        bound = 1.0 / math.sqrt(fan_in)
        key, kw, kb = jax.random.split(key, 3)
        w = jax.random.uniform(kw, (fan_out, fan_in), dtype, minval=-bound, maxval=bound)
        b = jax.random.uniform(kb, (fan_out,), dtype, minval=-bound, maxval=bound)
        params.append((w, b))
    return params


def actor_model_reference(x, params, tanh=None):
    """Pure-JAX reference for correctness checking (matches PyTorch x @ W.T + b)."""
    h = x
    n = len(params)
    for i, (w, b) in enumerate(params):
        h = h @ w.T + b
        if i < n - 1:
            h = jnp.maximum(h, 0.0)
        elif tanh:
            h = jnp.tanh(h)
    return h


# --------------------------------------------------------------------------------------
# Self-test
# --------------------------------------------------------------------------------------
if __name__ == "__main__":
    # Actor_Model(inner_shape=16, net_structure=[32, 32], out_shape=4, tanh=True)
    inner_shape = 16
    net_structure = [32, 32]
    out_shape = 4
    use_tanh = True

    key = jax.random.PRNGKey(0)
    key, kp = jax.random.split(key)
    params = init_actor_params(kp, inner_shape, net_structure, out_shape)

    # Test 1: tiny batch -> single grid step, no padding
    key, kx = jax.random.split(key)
    x_small = jax.random.normal(kx, (8, inner_shape), jnp.float32)
    out_small = actor_model_forward(x_small, params, net_structure, out_shape, tanh=use_tanh)
    out_small = jax.block_until_ready(out_small)
    ref_small = actor_model_reference(x_small, params, tanh=use_tanh)
    assert out_small.shape == (8, out_shape)
    assert jnp.allclose(out_small, ref_small, atol=1e-5, rtol=1e-5), "mismatch (small batch)"

    # Test 2: non-multiple batch -> still a single grid step, no padding
    key, kx2 = jax.random.split(key)
    x_big = jax.random.normal(kx2, (200, inner_shape), jnp.float32)
    out_big = actor_model_forward(x_big, params, net_structure, out_shape, tanh=use_tanh)
    out_big = jax.block_until_ready(out_big)
    ref_big = actor_model_reference(x_big, params, tanh=use_tanh)
    assert out_big.shape == (200, out_shape)
    assert jnp.allclose(out_big, ref_big, atol=1e-5, rtol=1e-5), "mismatch (single-step batch)"

    # Test 3: force the tiled (grid > 1, padded) path to exercise lane-blocked specs
    out_tiled = actor_model_forward(x_big, params, net_structure, out_shape, tanh=use_tanh,
                                    batch_tile=128)
    out_tiled = jax.block_until_ready(out_tiled)
    assert out_tiled.shape == (200, out_shape)
    assert jnp.allclose(out_tiled, ref_big, atol=1e-5, rtol=1e-5), "mismatch (tiled batch)"

    print("KERNEL_OK")
</pallas_src>

<mosaic_0001>
module attributes {stable_mosaic.version = 11 : i64} {
  func.func @_mlp_kernel(%arg0: i32, %arg1: memref<16x8xf32, #tpu.memory_space<vmem>>, %arg2: memref<32x16xf32, #tpu.memory_space<vmem>>, %arg3: memref<32x32xf32, #tpu.memory_space<vmem>>, %arg4: memref<4x32xf32, #tpu.memory_space<vmem>>, %arg5: memref<32x1xf32, #tpu.memory_space<vmem>>, %arg6: memref<32x1xf32, #tpu.memory_space<vmem>>, %arg7: memref<4x1xf32, #tpu.memory_space<vmem>>, %arg8: memref<4x8xf32, #tpu.memory_space<vmem>>) attributes {dimension_semantics = [#tpu.dimension_semantics<parallel>], iteration_bounds = array<i64: 1>, scalar_prefetch = 0 : i64, scratch_operands = 0 : i64, tpu.core_type = #tpu.core_type<tc>, window_params = [{transform_indices = @transform_0, window_bounds = array<i64: 16, 8>}, {pipeline_mode = #tpu.pipeline_mode<synchronous>, transform_indices = @transform_1, window_bounds = array<i64: 32, 16>}, {pipeline_mode = #tpu.pipeline_mode<synchronous>, transform_indices = @transform_2, window_bounds = array<i64: 32, 32>}, {pipeline_mode = #tpu.pipeline_mode<synchronous>, transform_indices = @transform_3, window_bounds = array<i64: 4, 32>}, {pipeline_mode = #tpu.pipeline_mode<synchronous>, transform_indices = @transform_4, window_bounds = array<i64: 32, 1>}, {pipeline_mode = #tpu.pipeline_mode<synchronous>, transform_indices = @transform_5, window_bounds = array<i64: 32, 1>}, {pipeline_mode = #tpu.pipeline_mode<synchronous>, transform_indices = @transform_6, window_bounds = array<i64: 4, 1>}, {transform_indices = @transform_7, window_bounds = array<i64: 4, 8>}]} {
    %c0 = arith.constant 0 : index
    %c0_0 = arith.constant 0 : index
    %0 = vector.load %arg1[%c0, %c0_0] : memref<16x8xf32, #tpu.memory_space<vmem>>, vector<16x8xf32>
    %c0_1 = arith.constant 0 : index
    %c0_2 = arith.constant 0 : index
    %1 = vector.load %arg2[%c0_1, %c0_2] : memref<32x16xf32, #tpu.memory_space<vmem>>, vector<32x16xf32>
    %c0_3 = arith.constant 0 : index
    %c0_4 = arith.constant 0 : index
    %2 = vector.load %arg5[%c0_3, %c0_4] : memref<32x1xf32, #tpu.memory_space<vmem>>, vector<32x1xf32>
    %cst = arith.constant dense<0.000000e+00> : vector<32x8xf32>
    %3 = tpu.matmul %1, %0, %cst {dimension_numbers = #tpu.dot_dimension_numbers<[1], [0], [0], [1], [0, 0, 1, 1], [], []>} : vector<32x16xf32>, vector<16x8xf32>, vector<32x8xf32> -> vector<32x8xf32>
    %4 = vector.broadcast %2 : vector<32x1xf32> to vector<32x8xf32>
    %5 = arith.addf %3, %4 : vector<32x8xf32>
    %cst_5 = arith.constant 0.000000e+00 : f32
    %6 = vector.broadcast %cst_5 : f32 to vector<32x8xf32>
    %7 = arith.maximumf %5, %6 : vector<32x8xf32>
    %c0_6 = arith.constant 0 : index
    %c0_7 = arith.constant 0 : index
    %8 = vector.load %arg3[%c0_6, %c0_7] : memref<32x32xf32, #tpu.memory_space<vmem>>, vector<32x32xf32>
    %c0_8 = arith.constant 0 : index
    %c0_9 = arith.constant 0 : index
    %9 = vector.load %arg6[%c0_8, %c0_9] : memref<32x1xf32, #tpu.memory_space<vmem>>, vector<32x1xf32>
    %cst_10 = arith.constant dense<0.000000e+00> : vector<32x8xf32>
    %10 = tpu.matmul %8, %7, %cst_10 {dimension_numbers = #tpu.dot_dimension_numbers<[1], [0], [0], [1], [0, 0, 1, 1], [], []>} : vector<32x32xf32>, vector<32x8xf32>, vector<32x8xf32> -> vector<32x8xf32>
    %11 = vector.broadcast %9 : vector<32x1xf32> to vector<32x8xf32>
    %12 = arith.addf %10, %11 : vector<32x8xf32>
    %cst_11 = arith.constant 0.000000e+00 : f32
    %13 = vector.broadcast %cst_11 : f32 to vector<32x8xf32>
    %14 = arith.maximumf %12, %13 : vector<32x8xf32>
    %c0_12 = arith.constant 0 : index
    %c0_13 = arith.constant 0 : index
    %15 = vector.load %arg4[%c0_12, %c0_13] : memref<4x32xf32, #tpu.memory_space<vmem>>, vector<4x32xf32>
    %c0_14 = arith.constant 0 : index
    %c0_15 = arith.constant 0 : index
    %16 = vector.load %arg7[%c0_14, %c0_15] : memref<4x1xf32, #tpu.memory_space<vmem>>, vector<4x1xf32>
    %cst_16 = arith.constant dense<0.000000e+00> : vector<4x8xf32>
    %17 = tpu.matmul %15, %14, %cst_16 {dimension_numbers = #tpu.dot_dimension_numbers<[1], [0], [0], [1], [0, 0, 1, 1], [], []>} : vector<4x32xf32>, vector<32x8xf32>, vector<4x8xf32> -> vector<4x8xf32>
    %18 = vector.broadcast %16 : vector<4x1xf32> to vector<4x8xf32>
    %19 = arith.addf %17, %18 : vector<4x8xf32>
    %20 = math.tanh %19 : vector<4x8xf32>
    %c0_17 = arith.constant 0 : index
    %c0_18 = arith.constant 0 : index
    %21 = vector.load %arg8[%c0_17, %c0_18] : memref<4x8xf32, #tpu.memory_space<vmem>>, vector<4x8xf32>
    tpu.vector_store %arg8[%c0_17, %c0_18], %20 {strides = array<i32>} : memref<4x8xf32, #tpu.memory_space<vmem>>, vector<4x8xf32>,
    return
  }
  func.func @transform_0(%arg0: i32) -> (i32, i32) {
    %c0_i32 = arith.constant 0 : i32
    %c0_i32_0 = arith.constant 0 : i32
    return %c0_i32, %arg0 : i32, i32
  }
  func.func @transform_1(%arg0: i32) -> (i32, i32) {
    %c0_i32 = arith.constant 0 : i32
    %c0_i32_0 = arith.constant 0 : i32
    %c0_i32_1 = arith.constant 0 : i32
    return %c0_i32, %c0_i32_0 : i32, i32
  }
  func.func @transform_2(%arg0: i32) -> (i32, i32) {
    %c0_i32 = arith.constant 0 : i32
    %c0_i32_0 = arith.constant 0 : i32
    %c0_i32_1 = arith.constant 0 : i32
    return %c0_i32, %c0_i32_0 : i32, i32
  }
  func.func @transform_3(%arg0: i32) -> (i32, i32) {
    %c0_i32 = arith.constant 0 : i32
    %c0_i32_0 = arith.constant 0 : i32
    %c0_i32_1 = arith.constant 0 : i32
    return %c0_i32, %c0_i32_0 : i32, i32
  }
  func.func @transform_4(%arg0: i32) -> (i32, i32) {
    %c0_i32 = arith.constant 0 : i32
    %c0_i32_0 = arith.constant 0 : i32
    %c0_i32_1 = arith.constant 0 : i32
    return %c0_i32, %c0_i32_0 : i32, i32
  }
  func.func @transform_5(%arg0: i32) -> (i32, i32) {
    %c0_i32 = arith.constant 0 : i32
    %c0_i32_0 = arith.constant 0 : i32
    %c0_i32_1 = arith.constant 0 : i32
    return %c0_i32, %c0_i32_0 : i32, i32
  }
  func.func @transform_6(%arg0: i32) -> (i32, i32) {
    %c0_i32 = arith.constant 0 : i32
    %c0_i32_0 = arith.constant 0 : i32
    %c0_i32_1 = arith.constant 0 : i32
    return %c0_i32, %c0_i32_0 : i32, i32
  }
  func.func @transform_7(%arg0: i32) -> (i32, i32) {
    %c0_i32 = arith.constant 0 : i32
    %c0_i32_0 = arith.constant 0 : i32
    return %c0_i32, %arg0 : i32, i32
  }
}

</mosaic_0001>

<llo_original>
// kernel: tpu_custom_call.1
$region0: #{tpu_custom_call.1}
  #allocation0 [shape = 'u32[]', space=smem, size = 0x4, offset = 0x4, fixed_abs, tag = 'smem constant byte address 0x4 - core index']
  #allocation1 [shape = 'u32[144,128]{1,0:T(1,128)}', space=vmem, size = 0x12000, scoped, tag = 'internal scratch']
  %s0 = inlined_call_operand.vmem [shape: f32[16,8], index: 0, kind: input, shape index: {}]
  %s1 = inlined_call_operand.vmem [shape: f32[32,16], index: 1, kind: input, shape index: {}]
  %s2 = inlined_call_operand.vmem [shape: f32[32,32], index: 2, kind: input, shape index: {}]
  %s3 = inlined_call_operand.vmem [shape: f32[4,32], index: 3, kind: input, shape index: {}]
  %s4 = inlined_call_operand.vmem [shape: f32[32,1], index: 4, kind: input, shape index: {}]
  %s5 = inlined_call_operand.vmem [shape: f32[32,1], index: 5, kind: input, shape index: {}]
  %s6 = inlined_call_operand.vmem [shape: f32[4,1], index: 6, kind: input, shape index: {}]
  %s7 = inlined_call_operand.hbm [shape: f32[4,8], index: 7, kind: output, shape index: {}]
  %s8 = sld [smem:[#allocation0]]
  $region38: #{tpu_custom_call.1} parent=0
    _
  %s10 = ssub.s32 1, %s8
  %s11 = scalar_select 0, %s10, %s8
  $region1: #{tpu_custom_call.1} parent=0
    #allocation2 [shape = 'u8[2048]{0}', space=vmem, size = 0x800, scoped, tag = 'output window, operand 0, single buffered']
    #allocation3 [shape = 's32[1]{0}', space=sflag, size = 0x4, scoped, tag = 'scoped memory for tpu_custom_call.1']
    %12 = vsyncpa [#allocation3], 0
    // Predicated region
    $region2: #{tpu_custom_call.1} parent=1 // pred_check
      _
    $region3: #{tpu_custom_call.1} parent=1 // pred_check_branch
      %14 = sbr.rel (0) target = $region5
    $region4: #{tpu_custom_call.1} parent=1 // pred_region
      _
    $region5: #{tpu_custom_call.1} parent=1 // pred_fallthru
      _
    // Predicated region
    $region6: #{tpu_custom_call.1} parent=1 // pred_check
      _
    $region7: #{tpu_custom_call.1} parent=1 // pred_check_branch
      %16 = sbr.rel (0) target = $region9
    $region8: #{tpu_custom_call.1} parent=1 // pred_region
      _
    $region9: #{tpu_custom_call.1} parent=1 // pred_fallthru
      _
    // Predicated region
    $region10: #{tpu_custom_call.1} parent=1 // pred_check
      _
    $region11: #{tpu_custom_call.1} parent=1 // pred_check_branch
      %18 = sbr.rel (0) target = $region13
    $region12: #{tpu_custom_call.1} parent=1 // pred_region
      _
    $region13: #{tpu_custom_call.1} parent=1 // pred_fallthru
      _
    // Predicated region
    $region14: #{tpu_custom_call.1} parent=1 // pred_check
      _
    $region15: #{tpu_custom_call.1} parent=1 // pred_check_branch
      %20 = sbr.rel (0) target = $region17
    $region16: #{tpu_custom_call.1} parent=1 // pred_region
      _
    $region17: #{tpu_custom_call.1} parent=1 // pred_fallthru
      _
    // Predicated region
    $region18: #{tpu_custom_call.1} parent=1 // pred_check
      _
    $region19: #{tpu_custom_call.1} parent=1 // pred_check_branch
      %22 = sbr.rel (0) target = $region21
    $region20: #{tpu_custom_call.1} parent=1 // pred_region
      _
    $region21: #{tpu_custom_call.1} parent=1 // pred_fallthru
      _
    // Predicated region
    $region22: #{tpu_custom_call.1} parent=1 // pred_check
      _
    $region23: #{tpu_custom_call.1} parent=1 // pred_check_branch
      %24 = sbr.rel (0) target = $region25
    $region24: #{tpu_custom_call.1} parent=1 // pred_region
      _
    $region25: #{tpu_custom_call.1} parent=1 // pred_fallthru
      _
    // Predicated region
    $region26: #{tpu_custom_call.1} parent=1 // pred_check
      _
    $region27: #{tpu_custom_call.1} parent=1 // pred_check_branch
      %26 = sbr.rel (0) target = $region29
    $region28: #{tpu_custom_call.1} parent=1 // pred_region
      _
    $region29: #{tpu_custom_call.1} parent=1 // pred_fallthru
      _
    %v27 = vld [vmem:[%s0] sm:$0xff]
    %v28 = vld [vmem:[%s0 + $0x8] sm:$0xff]
    %v29 = vld [vmem:[%s1] sm:$0xff]
    %v30 = vld [vmem:[%s1 + $0x8] sm:$0xff]
    %v31 = vld [vmem:[%s1 + $0x10] sm:$0xff]
    %v32 = vld [vmem:[%s1 + $0x18] sm:$0xff]
    %v33 = vld [vmem:[%s4] sm:$0xff]
    %v34 = vld [vmem:[%s4 + $0x8] sm:$0xff]
    %v35 = vld [vmem:[%s4 + $0x10] sm:$0xff]
    %v36 = vld [vmem:[%s4 + $0x18] sm:$0xff]
    %38 = vset.pattern.permute.xlu0 0
    %39 = vperm.xlu0 %38, %v33
    %v40 = vpop.permute.xlu0 %39
    %43 = vset.pattern.permute.xlu0 0
    %44 = vperm.xlu0 %43, %v34
    %v45 = vpop.permute.xlu0 %44
    %48 = vset.pattern.permute.xlu0 0
    %49 = vperm.xlu0 %48, %v35
    %v50 = vpop.permute.xlu0 %49
    %53 = vset.pattern.permute.xlu0 0
    %54 = vperm.xlu0 %53, %v36
    %v55 = vpop.permute.xlu0 %54
    %vm57 = vcmask 130048
    %v59 = vsel %vm57, %v29, 0
    %v62 = vsel %vm57, %v30, 0
    %v65 = vsel %vm57, %v31, 0
    %v68 = vsel %vm57, %v32, 0
    %70 = vmatprep.subr.mxu0 0.0
    %71 = vmatpush1.msra.mxu0 %v27
    %72 = vmatprep.subr.mxu0 0.0
    %73 = vmatpush1.msra.mxu0 %v28
    %74 = vmatprep.subr.mxu0 0.0
    %75 = vmatpush1.msra.mxu0 0.0
    %76 = vmatprep.subr.mxu0 0.0
    %77 = vmatpush1.msra.mxu0 0.0
    %78 = vmatprep.subr.mxu0 0.0
    %79 = vmatpush1.msra.mxu0 0.0
    %80 = vmatprep.subr.mxu0 0.0
    %81 = vmatpush1.msra.mxu0 0.0
    %82 = vmatprep.subr.mxu0 0.0
    %83 = vmatpush1.msra.mxu0 0.0
    %84 = vmatprep.subr.mxu0 0.0
    %85 = vmatpush1.msra.mxu0 0.0
    %86 = vmatprep.subr.mxu0 0.0
    %87 = vmatpush1.msra.mxu0 0.0
    %88 = vmatprep.subr.mxu0 0.0
    %89 = vmatpush1.msra.mxu0 0.0
    %90 = vmatprep.subr.mxu0 0.0
    %91 = vmatpush1.msra.mxu0 0.0
    %92 = vmatprep.subr.mxu0 0.0
    %93 = vmatpush1.msra.mxu0 0.0
    %94 = vmatprep.subr.mxu0 0.0
    %95 = vmatpush1.msra.mxu0 0.0
    %96 = vmatprep.subr.mxu0 0.0
    %97 = vmatpush1.msra.mxu0 0.0
    %98 = vmatprep.subr.mxu0 0.0
    %99 = vmatpush1.msra.mxu0 0.0
    %100 = vmatprep.subr.mxu0 0.0
    %101 = vmatpush1.msra.mxu0 0.0
    %102 = vmatprep.subr.mxu0 0.0
    %103 = vmatpush1.msra.mxu0 0.0
    %104 = vmatprep.subr.mxu0 0.0
    %105 = vmatpush1.msra.mxu0 0.0
    %106 = vmatprep.subr.mxu0 0.0
    %107 = vmatpush1.msra.mxu0 0.0
    %108 = vmatprep.subr.mxu0 0.0
    %109 = vmatpush1.msra.mxu0 0.0
    %110 = vmatprep.subr.mxu0 0.0
    %111 = vmatpush1.msra.mxu0 0.0
    %112 = vmatprep.subr.mxu0 0.0
    %113 = vmatpush1.msra.mxu0 0.0
    %114 = vmatprep.subr.mxu0 0.0
    %115 = vmatpush1.msra.mxu0 0.0
    %116 = vmatprep.subr.mxu0 0.0
    %117 = vmatpush1.msra.mxu0 0.0
    %118 = vmatprep.subr.mxu0 0.0
    %119 = vmatpush1.msra.mxu0 0.0
    %120 = vmatprep.subr.mxu0 0.0
    %121 = vmatpush1.msra.mxu0 0.0
    %122 = vmatprep.subr.mxu0 0.0
    %123 = vmatpush1.msra.mxu0 0.0
    %124 = vmatprep.subr.mxu0 0.0
    %125 = vmatpush1.msra.mxu0 0.0
    %126 = vmatprep.subr.mxu0 0.0
    %127 = vmatpush1.msra.mxu0 0.0
    %128 = vmatprep.subr.mxu0 0.0
    %129 = vmatpush1.msra.mxu0 0.0
    %130 = vmatprep.subr.mxu0 0.0
    %131 = vmatpush1.msra.mxu0 0.0
    %132 = vmatprep.subr.mxu0 0.0
    %133 = vmatpush1.msra.mxu0 0.0
    %134 = vmatprep.mubr.f32.mxu0 0.0
    %135 = vmatmul.mubr.f32.gmra.mrb[0].mxu0 %v59
    %v136 = vpop.f32.mrb[0].mxu0
    %v137 = vadd.f32 %v40, %v136
    %v138 = vpop.f32.mrb[0].mxu0
    %139 = vmatprep.mubr.f32.mxu0 0.0
    %140 = vmatmul.mubr.f32.gmra.mrb[0].mxu0 %v62
    %v141 = vpop.f32.mrb[0].mxu0
    %v142 = vadd.f32 %v45, %v141
    %v143 = vpop.f32.mrb[0].mxu0
    %144 = vmatprep.mubr.f32.mxu0 0.0
    %145 = vmatmul.mubr.f32.gmra.mrb[0].mxu0 %v65
    %v146 = vpop.f32.mrb[0].mxu0
    %v147 = vadd.f32 %v50, %v146
    %v148 = vpop.f32.mrb[0].mxu0
    %149 = vmatprep.mubr.f32.mxu0 0.0
    %150 = vmatmul.mubr.f32.gmra.mrb[0].mxu0 %v68
    %v151 = vpop.f32.mrb[0].mxu0
    %v152 = vadd.f32 %v55, %v151
    %v153 = vpop.f32.mrb[0].mxu0
    %154 = vdwg.mxu0
    %v155 = vmax.f32 %v137, 0.0
    %v156 = vmax.f32 %v142, 0.0
    %v157 = vmax.f32 %v147, 0.0
    %v158 = vmax.f32 %v152, 0.0
    %v159 = vld [vmem:[%s2] sm:$0xff]
    %v160 = vld [vmem:[%s2 + $0x8] sm:$0xff]
    %v161 = vld [vmem:[%s2 + $0x10] sm:$0xff]
    %v162 = vld [vmem:[%s2 + $0x18] sm:$0xff]
    %v163 = vld [vmem:[%s5] sm:$0xff]
    %v164 = vld [vmem:[%s5 + $0x8] sm:$0xff]
    %v165 = vld [vmem:[%s5 + $0x10] sm:$0xff]
    %v166 = vld [vmem:[%s5 + $0x18] sm:$0xff]
    %168 = vset.pattern.permute.xlu0 0
    %169 = vperm.xlu0 %168, %v163
    %v170 = vpop.permute.xlu0 %169
    %173 = vset.pattern.permute.xlu0 0
    %174 = vperm.xlu0 %173, %v164
    %v175 = vpop.permute.xlu0 %174
    %178 = vset.pattern.permute.xlu0 0
    %179 = vperm.xlu0 %178, %v165
    %v180 = vpop.permute.xlu0 %179
    %183 = vset.pattern.permute.xlu0 0
    %184 = vperm.xlu0 %183, %v166
    %v185 = vpop.permute.xlu0 %184
    %vm187 = vcmask 261120
    %v189 = vsel %vm187, %v159, 0
    %v192 = vsel %vm187, %v160, 0
    %v195 = vsel %vm187, %v161, 0
    %v198 = vsel %vm187, %v162, 0
    %200 = vmatprep.subr.mxu0 0.0
    %201 = vmatpush1.msra.mxu0 %v155
    %202 = vmatprep.subr.mxu0 0.0
    %203 = vmatpush1.msra.mxu0 %v156
    %204 = vmatprep.subr.mxu0 0.0
    %205 = vmatpush1.msra.mxu0 %v157
    %206 = vmatprep.subr.mxu0 0.0
    %207 = vmatpush1.msra.mxu0 %v158
    %208 = vmatprep.subr.mxu0 0.0
    %209 = vmatpush1.msra.mxu0 0.0
    %210 = vmatprep.subr.mxu0 0.0
    %211 = vmatpush1.msra.mxu0 0.0
    %212 = vmatprep.subr.mxu0 0.0
    %213 = vmatpush1.msra.mxu0 0.0
    %214 = vmatprep.subr.mxu0 0.0
    %215 = vmatpush1.msra.mxu0 0.0
    %216 = vmatprep.subr.mxu0 0.0
    %217 = vmatpush1.msra.mxu0 0.0
    %218 = vmatprep.subr.mxu0 0.0
    %219 = vmatpush1.msra.mxu0 0.0
    %220 = vmatprep.subr.mxu0 0.0
    %221 = vmatpush1.msra.mxu0 0.0
    %222 = vmatprep.subr.mxu0 0.0
    %223 = vmatpush1.msra.mxu0 0.0
    %224 = vmatprep.subr.mxu0 0.0
    %225 = vmatpush1.msra.mxu0 0.0
    %226 = vmatprep.subr.mxu0 0.0
    %227 = vmatpush1.msra.mxu0 0.0
    %228 = vmatprep.subr.mxu0 0.0
    %229 = vmatpush1.msra.mxu0 0.0
    %230 = vmatprep.subr.mxu0 0.0
    %231 = vmatpush1.msra.mxu0 0.0
    %232 = vmatprep.subr.mxu0 0.0
    %233 = vmatpush1.msra.mxu0 0.0
    %234 = vmatprep.subr.mxu0 0.0
    %235 = vmatpush1.msra.mxu0 0.0
    %236 = vmatprep.subr.mxu0 0.0
    %237 = vmatpush1.msra.mxu0 0.0
    %238 = vmatprep.subr.mxu0 0.0
    %239 = vmatpush1.msra.mxu0 0.0
    %240 = vmatprep.subr.mxu0 0.0
    %241 = vmatpush1.msra.mxu0 0.0
    %242 = vmatprep.subr.mxu0 0.0
    %243 = vmatpush1.msra.mxu0 0.0
    %244 = vmatprep.subr.mxu0 0.0
    %245 = vmatpush1.msra.mxu0 0.0
    %246 = vmatprep.subr.mxu0 0.0
    %247 = vmatpush1.msra.mxu0 0.0
    %248 = vmatprep.subr.mxu0 0.0
    %249 = vmatpush1.msra.mxu0 0.0
    %250 = vmatprep.subr.mxu0 0.0
    %251 = vmatpush1.msra.mxu0 0.0
    %252 = vmatprep.subr.mxu0 0.0
    %253 = vmatpush1.msra.mxu0 0.0
    %254 = vmatprep.subr.mxu0 0.0
    %255 = vmatpush1.msra.mxu0 0.0
    %256 = vmatprep.subr.mxu0 0.0
    %257 = vmatpush1.msra.mxu0 0.0
    %258 = vmatprep.subr.mxu0 0.0
    %259 = vmatpush1.msra.mxu0 0.0
    %260 = vmatprep.subr.mxu0 0.0
    %261 = vmatpush1.msra.mxu0 0.0
    %262 = vmatprep.subr.mxu0 0.0
    %263 = vmatpush1.msra.mxu0 0.0
    %264 = vmatprep.mubr.f32.mxu0 0.0
    %265 = vmatmul.mubr.f32.gmra.mrb[0].mxu0 %v189
    %v266 = vpop.f32.mrb[0].mxu0
    %v267 = vadd.f32 %v170, %v266
    %v268 = vpop.f32.mrb[0].mxu0
    %269 = vmatprep.mubr.f32.mxu0 0.0
    %270 = vmatmul.mubr.f32.gmra.mrb[0].mxu0 %v192
    %v271 = vpop.f32.mrb[0].mxu0
    %v272 = vadd.f32 %v175, %v271
    %v273 = vpop.f32.mrb[0].mxu0
    %274 = vmatprep.mubr.f32.mxu0 0.0
    %275 = vmatmul.mubr.f32.gmra.mrb[0].mxu0 %v195
    %v276 = vpop.f32.mrb[0].mxu0
    %v277 = vadd.f32 %v180, %v276
    %v278 = vpop.f32.mrb[0].mxu0
    %279 = vmatprep.mubr.f32.mxu0 0.0
    %280 = vmatmul.mubr.f32.gmra.mrb[0].mxu0 %v198
    %v281 = vpop.f32.mrb[0].mxu0
    %v282 = vadd.f32 %v185, %v281
    %v283 = vpop.f32.mrb[0].mxu0
    %284 = vdwg.mxu0
    %v285 = vmax.f32 %v267, 0.0
    %v286 = vmax.f32 %v272, 0.0
    %v287 = vmax.f32 %v277, 0.0
    %v288 = vmax.f32 %v282, 0.0
    %v289 = vld [vmem:[%s3] sm:$0xf]
    %v290 = vld [vmem:[%s6] sm:$0xf]
    %292 = vset.pattern.permute.xlu0 0
    %293 = vperm.xlu0 %292, %v290
    %v294 = vpop.permute.xlu0 %293
    %v297 = vsel %vm187, %v289, 0
    %299 = vmatprep.subr.mxu0 0.0
    %300 = vmatpush1.msra.mxu0 %v285
    %301 = vmatprep.subr.mxu0 0.0
    %302 = vmatpush1.msra.mxu0 %v286
    %303 = vmatprep.subr.mxu0 0.0
    %304 = vmatpush1.msra.mxu0 %v287
    %305 = vmatprep.subr.mxu0 0.0
    %306 = vmatpush1.msra.mxu0 %v288
    %307 = vmatprep.subr.mxu0 0.0
    %308 = vmatpush1.msra.mxu0 0.0
    %309 = vmatprep.subr.mxu0 0.0
    %310 = vmatpush1.msra.mxu0 0.0
    %311 = vmatprep.subr.mxu0 0.0
    %312 = vmatpush1.msra.mxu0 0.0
    %313 = vmatprep.subr.mxu0 0.0
    %314 = vmatpush1.msra.mxu0 0.0
    %315 = vmatprep.subr.mxu0 0.0
    %316 = vmatpush1.msra.mxu0 0.0
    %317 = vmatprep.subr.mxu0 0.0
    %318 = vmatpush1.msra.mxu0 0.0
    %319 = vmatprep.subr.mxu0 0.0
    %320 = vmatpush1.msra.mxu0 0.0
    %321 = vmatprep.subr.mxu0 0.0
    %322 = vmatpush1.msra.mxu0 0.0
    %323 = vmatprep.subr.mxu0 0.0
    %324 = vmatpush1.msra.mxu0 0.0
    %325 = vmatprep.subr.mxu0 0.0
    %326 = vmatpush1.msra.mxu0 0.0
    %327 = vmatprep.subr.mxu0 0.0
    %328 = vmatpush1.msra.mxu0 0.0
    %329 = vmatprep.subr.mxu0 0.0
    %330 = vmatpush1.msra.mxu0 0.0
    %331 = vmatprep.subr.mxu0 0.0
    %332 = vmatpush1.msra.mxu0 0.0
    %333 = vmatprep.subr.mxu0 0.0
    %334 = vmatpush1.msra.mxu0 0.0
    %335 = vmatprep.subr.mxu0 0.0
    %336 = vmatpush1.msra.mxu0 0.0
    %337 = vmatprep.subr.mxu0 0.0
    %338 = vmatpush1.msra.mxu0 0.0
    %339 = vmatprep.subr.mxu0 0.0
    %340 = vmatpush1.msra.mxu0 0.0
    %341 = vmatprep.subr.mxu0 0.0
    %342 = vmatpush1.msra.mxu0 0.0
    %343 = vmatprep.subr.mxu0 0.0
    %344 = vmatpush1.msra.mxu0 0.0
    %345 = vmatprep.subr.mxu0 0.0
    %346 = vmatpush1.msra.mxu0 0.0
    %347 = vmatprep.subr.mxu0 0.0
    %348 = vmatpush1.msra.mxu0 0.0
    %349 = vmatprep.subr.mxu0 0.0
    %350 = vmatpush1.msra.mxu0 0.0
    %351 = vmatprep.subr.mxu0 0.0
    %352 = vmatpush1.msra.mxu0 0.0
    %353 = vmatprep.subr.mxu0 0.0
    %354 = vmatpush1.msra.mxu0 0.0
    %355 = vmatprep.subr.mxu0 0.0
    %356 = vmatpush1.msra.mxu0 0.0
    %357 = vmatprep.subr.mxu0 0.0
    %358 = vmatpush1.msra.mxu0 0.0
    %359 = vmatprep.subr.mxu0 0.0
    %360 = vmatpush1.msra.mxu0 0.0
    %361 = vmatprep.subr.mxu0 0.0
    %362 = vmatpush1.msra.mxu0 0.0
    %363 = vmatprep.mubr.f32.mxu0 0.0
    %364 = vmatmul.mubr.f32.gmra.mrb[0].mxu0 %v297
    %v365 = vpop.f32.mrb[0].mxu0
    %v366 = vadd.f32 %v294, %v365
    %v367 = vpop.f32.mrb[0].mxu0
    %368 = vdwg.mxu0
    %v369 = vtanh.pop %v366
    %vm370 = vcmask 60416
    %371 = vst.msk [vmem:[#allocation2] sm:$0xf] %vm370, %v369
    // Predicated region
    $region30: #{tpu_custom_call.1} parent=1 // pred_check
      _
    $region31: #{tpu_custom_call.1} parent=1 // pred_check_branch
      %373 = sbr.rel (0) target = $region33
    $region32: #{tpu_custom_call.1} parent=1 // pred_region
      %s375 = ssub.s32 64, 64
      %376 = vsyncadd [#allocation3], %s375
      %s378 = sshll.u32 [#allocation2], 4
      %s379 = int_to_ptr.vmem [resolvable:$true] %s378
      %381 = dma.vmem_to_hbm [thread:$0]  %s379, 64, %s7, [#allocation3]
    $region33: #{tpu_custom_call.1} parent=1 // pred_fallthru
      _
    // Predicated region
    $region34: #{tpu_custom_call.1} parent=1 // pred_check
      _
    $region35: #{tpu_custom_call.1} parent=1 // pred_check_branch
      %383 = sbr.rel (0) target = $region37
    $region36: #{tpu_custom_call.1} parent=1 // pred_region
      %384 = dma.done [#allocation3], 64
    $region37: #{tpu_custom_call.1} parent=1 // pred_fallthru
      _
    %385 = vsyncpa [#allocation3], 1

</llo_original>
